<compile_context>
chip_gen: v7x
topology: tpu7x:2x2x1
jax: 0.10.0
libtpu: 0.0.40
codegen_flags: <defaults>
</compile_context>

<pallas_src>
import math

import jax
import jax.numpy as jnp
from jax.experimental import pallas as pl
from jax.experimental.pallas import tpu as pltpu


def _add_pe_kernel(pos_ref, seq_ref, out_ref):
    # pos_ref broadcasts over the leading (batch) axis of seq_ref.
    out_ref[...] = (seq_ref[...] + pos_ref[...]).astype(out_ref.dtype)


def make_pe_table(d_model: int, max_len: int = 5000) -> jnp.ndarray:
    """Sinusoidal table identical to the torch module's registered buffer
    (without the leading unsqueeze(0))."""
    assert d_model % 2 == 0
    position = jnp.arange(max_len, dtype=jnp.float32)[:, None]
    div_term = jnp.exp(
        jnp.arange(0, d_model, 2, dtype=jnp.float32) * (-math.log(10000.0) / d_model)
    )
    pe = jnp.zeros((max_len, d_model), dtype=jnp.float32)
    pe = pe.at[:, 0::2].set(jnp.sin(position * div_term))
    pe = pe.at[:, 1::2].set(jnp.cos(position * div_term))
    return pe


def _vmem_budgets():
    """(total budget for pipelined seq/out blocks, vmem_limit_bytes), per chip."""
    try:
        cap = int(pltpu.get_tpu_info().vmem_capacity_bytes)
    except Exception:  # interpret mode / older runtimes: assume smallest (v7x per-TC)
        cap = 64 * 1024 * 1024
    total = min(cap // 2, 48 * 1024 * 1024)          # 32 MiB on v7x, 48 MiB v5e/v6e
    limit = min(cap, total + 16 * 1024 * 1024)       # headroom for pe slab + misc
    return total, limit


def _round_up(x: int, m: int) -> int:
    return -(-x // m) * m


def _pick_batch_tile(B: int, row_bytes: int, itemsize: int, total_budget: int) -> int:
    """Rows of the batch per grid step: the largest sublane-tile multiple that
    fits the per-block VMEM budget, capped so the grid has >= 2 parallel steps
    when the batch is big enough (v7x megacore). Ragged last block is fine."""
    sub = max(8, 32 // max(itemsize, 1))              # 8 f32 / 16 bf16 / 32 int8-fp8
    block_budget = max(total_budget // 4, 1)          # seq-in + out, double-buffered
    fit = max(sub, (block_budget // max(row_bytes, 1)) // sub * sub)
    if B >= 2 * sub:
        # Keep at least two grid steps so the "parallel" axis can be sharded
        # across v7x's two TensorCores; negligible cost on single-TC chips.
        fit = min(fit, _round_up(-(-B // 2), sub))
    return B if B <= fit else fit


def positional_encoding_forward(seq, pe, *, min_pallas_bytes=256 * 1024,
                                donate_seq=False):
    """seq: (B, S, D); pe: (max_len, D) float32.
    Returns (out, pos_enc) matching the torch forward:
      out = seq + pe[:S] (broadcast over batch), pos_enc = pe[None, :S, :]."""
    assert seq.ndim == 3
    B, S, D = seq.shape
    max_len, d_model = pe.shape
    assert D == d_model and S <= max_len

    # pe slab in the input dtype: native bf16 VPU add on v6e/v7x, no-op for f32.
    pos = pe[:S].astype(seq.dtype)        # (S, D) == torch's self.pe[:, :S, :]
    pos_enc = pos[None, :, :]             # (1, S, D) second output, grid-invariant

    # Tiny tensors: pallas_call launch + pipeline priming dwarfs the add.
    if seq.size * seq.dtype.itemsize < min_pallas_bytes:
        return seq + pos_enc, pos_enc

    itemsize = seq.dtype.itemsize
    total_budget, vmem_limit = _vmem_budgets()
    row_bytes = S * D * itemsize
    Bt = _pick_batch_tile(B, row_bytes, itemsize, total_budget)
    grid = (pl.cdiv(B, Bt),)

    if (S * D) % 128 == 0:
        # Lane-dense path: trailing dim is a 128-multiple -> full unmasked vst's.
        F = S * D
        seq_in = seq.reshape(B, F)
        pos_in = pos.reshape(1, F)
        in_specs = [
            pl.BlockSpec((1, F), lambda i: (0, 0)),      # pe slab, same every step
            pl.BlockSpec((Bt, F), lambda i: (i, 0)),     # batch tile of seq
        ]
        out_spec = pl.BlockSpec((Bt, F), lambda i: (i, 0))
        out_shape = jax.ShapeDtypeStruct((B, F), seq.dtype)
    else:
        # 3-D fallback: keep D on the lane axis; (S, D) equal full dims -> legal.
        seq_in = seq
        pos_in = pos[None, :, :]
        in_specs = [
            pl.BlockSpec((1, S, D), lambda i: (0, 0, 0)),
            pl.BlockSpec((Bt, S, D), lambda i: (i, 0, 0)),
        ]
        out_spec = pl.BlockSpec((Bt, S, D), lambda i: (i, 0, 0))
        out_shape = jax.ShapeDtypeStruct((B, S, D), seq.dtype)

    out = pl.pallas_call(
        _add_pe_kernel,
        out_shape=out_shape,
        grid_spec=pltpu.PrefetchScalarGridSpec(
            num_scalar_prefetch=0,
            grid=grid,
            in_specs=in_specs,
            out_specs=out_spec,
        ),
        compiler_params=pltpu.CompilerParams(
            dimension_semantics=("parallel",),
            vmem_limit_bytes=vmem_limit,
        ),
        input_output_aliases=({1: 0} if donate_seq else {}),
    )(pos_in, seq_in)

    return out.reshape(B, S, D), pos_enc


def _reference(seq, pe):
    """Pure-JAX mirror of the torch forward."""
    pos_enc = pe[None, : seq.shape[1], :]
    return seq + pos_enc, pos_enc


if __name__ == "__main__":
    max_len = 5000  # torch default
    key = jax.random.PRNGKey(0)

    # Case 1: lane-dense flattened path (S*D = 256, a 128-multiple).
    B, S, D = 2, 8, 32
    pe = make_pe_table(D, max_len)
    seq = jax.random.normal(key, (B, S, D), dtype=jnp.float32)
    out, pos_enc = positional_encoding_forward(seq, pe, min_pallas_bytes=0)
    jax.block_until_ready((out, pos_enc))
    ref_out, ref_pos = _reference(seq, pe)
    assert out.shape == (B, S, D) and pos_enc.shape == (1, S, D)
    assert jnp.allclose(out, ref_out, atol=1e-6, rtol=1e-6)
    assert jnp.allclose(pos_enc, ref_pos)

    # Case 2: 3-D block fallback path (S*D = 224, not a 128-multiple).
    B2, S2, D2 = 2, 7, 32
    pe2 = make_pe_table(D2, max_len)
    seq2 = jax.random.normal(jax.random.PRNGKey(1), (B2, S2, D2), dtype=jnp.float32)
    out2, pos_enc2 = positional_encoding_forward(seq2, pe2, min_pallas_bytes=0)
    jax.block_until_ready((out2, pos_enc2))
    ref_out2, ref_pos2 = _reference(seq2, pe2)
    assert out2.shape == (B2, S2, D2) and pos_enc2.shape == (1, S2, D2)
    assert jnp.allclose(out2, ref_out2, atol=1e-6, rtol=1e-6)
    assert jnp.allclose(pos_enc2, ref_pos2)

    print("KERNEL_OK")
</pallas_src>

<mosaic_0001>
module attributes {stable_mosaic.version = 11 : i64} {
  func.func @_add_pe_kernel(%arg0: i32, %arg1: memref<1x256xf32, #tpu.memory_space<vmem>>, %arg2: memref<2x256xf32, #tpu.memory_space<vmem>>, %arg3: memref<2x256xf32, #tpu.memory_space<vmem>>) attributes {dimension_semantics = [#tpu.dimension_semantics<parallel>], iteration_bounds = array<i64: 1>, scalar_prefetch = 0 : i64, scratch_operands = 0 : i64, tpu.core_type = #tpu.core_type<tc>, window_params = [{pipeline_mode = #tpu.pipeline_mode<synchronous>, transform_indices = @transform_0, window_bounds = array<i64: 1, 256>}, {transform_indices = @transform_1, window_bounds = array<i64: 2, 256>}, {transform_indices = @transform_2, window_bounds = array<i64: 2, 256>}]} {
    %c0 = arith.constant 0 : index
    %c0_0 = arith.constant 0 : index
    %0 = vector.load %arg2[%c0, %c0_0] : memref<2x256xf32, #tpu.memory_space<vmem>>, vector<2x256xf32>
    %c0_1 = arith.constant 0 : index
    %c0_2 = arith.constant 0 : index
    %1 = vector.load %arg1[%c0_1, %c0_2] : memref<1x256xf32, #tpu.memory_space<vmem>>, vector<1x256xf32>
    %2 = vector.broadcast %1 : vector<1x256xf32> to vector<2x256xf32>
    %3 = arith.addf %0, %2 : vector<2x256xf32>
    %c0_3 = arith.constant 0 : index
    %c0_4 = arith.constant 0 : index
    %4 = vector.load %arg3[%c0_3, %c0_4] : memref<2x256xf32, #tpu.memory_space<vmem>>, vector<2x256xf32>
    tpu.vector_store %arg3[%c0_3, %c0_4], %3 {strides = array<i32>} : memref<2x256xf32, #tpu.memory_space<vmem>>, vector<2x256xf32>,
    return
  }
  func.func @transform_0(%arg0: i32) -> (i32, i32) {
    %c0_i32 = arith.constant 0 : i32
    %c0_i32_0 = arith.constant 0 : i32
    %c0_i32_1 = arith.constant 0 : i32
    return %c0_i32, %c0_i32_0 : i32, i32
  }
  func.func @transform_1(%arg0: i32) -> (i32, i32) {
    %c0_i32 = arith.constant 0 : i32
    %c0_i32_0 = arith.constant 0 : i32
    return %arg0, %c0_i32 : i32, i32
  }
  func.func @transform_2(%arg0: i32) -> (i32, i32) {
    %c0_i32 = arith.constant 0 : i32
    %c0_i32_0 = arith.constant 0 : i32
    return %arg0, %c0_i32 : i32, i32
  }
}

</mosaic_0001>

<llo_original>
// kernel: tpu_custom_call.1
$region0: #{tpu_custom_call.1}
  #allocation0 [shape = 'u32[]', space=smem, size = 0x4, offset = 0x4, fixed_abs, tag = 'smem constant byte address 0x4 - core index']
  #allocation1 [shape = 'u32[144,128]{1,0:T(1,128)}', space=vmem, size = 0x12000, scoped, tag = 'internal scratch']
  %s0 = inlined_call_operand.hbm [shape: f32[1,256], index: 0, kind: input, shape index: {}]
  %s1 = inlined_call_operand.hbm [shape: f32[2,256], index: 1, kind: input, shape index: {}]
  %s2 = inlined_call_operand.hbm [shape: f32[2,256], index: 2, kind: output, shape index: {}]
  %s3 = sld [smem:[#allocation0]]
  $region26: #{tpu_custom_call.1} parent=0
    _
  %s5 = ssub.s32 1, %s3
  %s6 = scalar_select 0, %s5, %s3
  $region1: #{tpu_custom_call.1} parent=0
    #allocation2 [shape = 'u8[1024]{0}', space=vmem, size = 0x400, scoped, tag = 'input window, operand 0, single buffered']
    #allocation3 [shape = 's32[1]{0}', space=sflag, size = 0x4, scoped, tag = 'scoped memory for tpu_custom_call.1']
    #allocation4 [shape = 's32[1]{0}', space=sflag, size = 0x4, scoped, tag = 'scoped memory for tpu_custom_call.1']
    #allocation5 [shape = 'u8[2048]{0}', space=vmem, size = 0x800, scoped, tag = 'input window, operand 1, single buffered']
    #allocation6 [shape = 's32[1]{0}', space=sflag, size = 0x4, scoped, tag = 'scoped memory for tpu_custom_call.1']
    #allocation7 [shape = 'u8[2048]{0}', space=vmem, size = 0x800, scoped, tag = 'output window, operand 0, single buffered']
    %7 = vsyncpa [#allocation3], 0
    %8 = vsyncpa [#allocation6], 0
    %9 = vsyncpa [#allocation4], 0
    // Predicated region
    $region2: #{tpu_custom_call.1} parent=1 // pred_check
      _
    $region3: #{tpu_custom_call.1} parent=1 // pred_check_branch
      %11 = sbr.rel (0) target = $region5
    $region4: #{tpu_custom_call.1} parent=1 // pred_region
      %s13 = ssub.s32 32, 32
      %14 = vsyncadd [#allocation3], %s13
      %s16 = sshll.u32 [#allocation2], 4
      %s17 = int_to_ptr.vmem [resolvable:$true] %s16
      %19 = dma.hbm_to_vmem [thread:$0]  %s0, 32, %s17, [#allocation3]
    $region5: #{tpu_custom_call.1} parent=1 // pred_fallthru
      _
    // Predicated region
    $region6: #{tpu_custom_call.1} parent=1 // pred_check
      _
    $region7: #{tpu_custom_call.1} parent=1 // pred_check_branch
      %21 = sbr.rel (0) target = $region9
    $region8: #{tpu_custom_call.1} parent=1 // pred_region
      %s23 = ssub.s32 64, 64
      %24 = vsyncadd [#allocation6], %s23
      %s26 = sshll.u32 [#allocation5], 4
      %s27 = int_to_ptr.vmem [resolvable:$true] %s26
      %29 = dma.hbm_to_vmem [thread:$0]  %s1, 64, %s27, [#allocation6]
    $region9: #{tpu_custom_call.1} parent=1 // pred_fallthru
      _
    // Predicated region
    $region10: #{tpu_custom_call.1} parent=1 // pred_check
      _
    $region11: #{tpu_custom_call.1} parent=1 // pred_check_branch
      %31 = sbr.rel (0) target = $region13
    $region12: #{tpu_custom_call.1} parent=1 // pred_region
      %32 = dma.done [#allocation3], 32
    $region13: #{tpu_custom_call.1} parent=1 // pred_fallthru
      _
    // Predicated region
    $region14: #{tpu_custom_call.1} parent=1 // pred_check
      _
    $region15: #{tpu_custom_call.1} parent=1 // pred_check_branch
      %34 = sbr.rel (0) target = $region17
    $region16: #{tpu_custom_call.1} parent=1 // pred_region
      %35 = dma.done [#allocation6], 64
    $region17: #{tpu_custom_call.1} parent=1 // pred_fallthru
      _
    %v36 = vld [vmem:[#allocation5] sm:$0xf]
    %v37 = vld [vmem:[#allocation2] sm:$0x3]
    %v39 = vlaneseq
    %v40 = vshrl.u32 %v39, 7
    %v41 = vsub.s32 0, %v40
    %v42 = vrot.slane %v37, %v41
    %v43 = vlaneseq
    %v44 = vshrl.u32 %v43, 7
    %v45 = vsub.s32 1, %v44
    %v46 = vrot.slane %v37, %v45
    %v47 = vcombine.low %v42, %v46
    %v49 = vunpack.c.l.s4 1983009808
    %v50 = vunpack.c.0.s8 %v49
    %v51 = vlaneseq
    %v52 = vshrl.u32 %v51, 7
    %v53 = vsub.s32 %v50, %v52
    %v54 = vrot.slane %v47, %v53
    %v56 = vadd.f32 %v36, %v54
    %57 = vst [vmem:[#allocation7] sm:$0xf] %v56
    // Predicated region
    $region18: #{tpu_custom_call.1} parent=1 // pred_check
      _
    $region19: #{tpu_custom_call.1} parent=1 // pred_check_branch
      %59 = sbr.rel (0) target = $region21
    $region20: #{tpu_custom_call.1} parent=1 // pred_region
      %s61 = ssub.s32 64, 64
      %62 = vsyncadd [#allocation4], %s61
      %s64 = sshll.u32 [#allocation7], 4
      %s65 = int_to_ptr.vmem [resolvable:$true] %s64
      %67 = dma.vmem_to_hbm [thread:$0]  %s65, 64, %s2, [#allocation4]
    $region21: #{tpu_custom_call.1} parent=1 // pred_fallthru
      _
    // Predicated region
    $region22: #{tpu_custom_call.1} parent=1 // pred_check
      _
    $region23: #{tpu_custom_call.1} parent=1 // pred_check_branch
      %69 = sbr.rel (0) target = $region25
    $region24: #{tpu_custom_call.1} parent=1 // pred_region
      %70 = dma.done [#allocation4], 64
    $region25: #{tpu_custom_call.1} parent=1 // pred_fallthru
      _
    %71 = vsyncpa [#allocation3], 1
    %72 = vsyncpa [#allocation6], 1
    %73 = vsyncpa [#allocation4], 1

</llo_original>
